<compile_context>
chip_gen: v5e
topology: v5e:2x2
jax: 0.10.0
libtpu: 0.0.40
codegen_flags: <defaults>
</compile_context>

<pallas_src>
import functools
import math

import jax
import jax.numpy as jnp
from jax.experimental import pallas as pl
from jax.experimental.pallas import tpu as pltpu

EPS = 1e-6


# ------------------------------- hardware config ---------------------------- #

@functools.lru_cache(maxsize=None)
def _hw_config():
    try:
        kind = jax.devices()[0].device_kind.lower()
    except Exception:
        kind = ""
    if "v7" in kind:
        return {"q_cap": 256, "row_cap": 512, "vmem": 48 * 1024 * 1024}
    if "v6" in kind:
        return {"q_cap": 256, "row_cap": 1024, "vmem": 100 * 1024 * 1024}
    if "v5" in kind:
        return {"q_cap": 128, "row_cap": 1024, "vmem": 100 * 1024 * 1024}
    return {"q_cap": 128, "row_cap": 512, "vmem": 64 * 1024 * 1024}


def _compiler_params(dims):
    return pltpu.CompilerParams(dimension_semantics=dims,
                                vmem_limit_bytes=_hw_config()["vmem"])


@functools.lru_cache(maxsize=None)
def _buffered_one_ok():
    """Probe whether pipeline_mode=pl.Buffered(1) is supported by this Pallas."""
    if not hasattr(pl, "Buffered"):
        return False
    try:
        def _probe(x_ref, o_ref):
            o_ref[...] = x_ref[...]
        spec = pl.BlockSpec((8, 128), lambda i: (0, 0), pipeline_mode=pl.Buffered(1))
        out = pl.pallas_call(
            _probe,
            out_shape=jax.ShapeDtypeStruct((8, 128), jnp.float32),
            grid=(1,),
            in_specs=[spec],
            out_specs=pl.BlockSpec((8, 128), lambda i: (0, 0)),
        )(jnp.zeros((8, 128), jnp.float32))
        jax.block_until_ready(out)
        return True
    except Exception:
        return False


def _const_spec(shape):
    """BlockSpec for a constant-index (never-changing) input block.

    Uses a single buffer (pl.Buffered(1)) when supported, to avoid wasting VMEM
    on the unused second pipeline buffer of weights/biases.
    """
    nd = len(shape)
    idx = lambda *args: (0,) * nd
    if _buffered_one_ok():
        return pl.BlockSpec(shape, idx, pipeline_mode=pl.Buffered(1))
    return pl.BlockSpec(shape, idx)


# ------------------------------- small helpers ------------------------------ #

def _layernorm(x, gamma, beta, eps):
    # Annotated-Transformer LayerNorm: a_2 * (x - mean) / (std + eps) + b_2,
    # unbiased std (torch.Tensor.std default, divide by D-1).  Computed in f32.
    d = x.shape[-1]
    mean = jnp.mean(x, axis=-1, keepdims=True)
    var = jnp.sum((x - mean) ** 2, axis=-1, keepdims=True) / (d - 1)
    std = jnp.sqrt(var)
    return gamma * (x - mean) / (std + eps) + beta


def _choose_q_tile(t, cap):
    """Largest multiple-of-8 divisor of t that is <= cap; else t (full)."""
    c = max(8, min(cap, t))
    tile = (c // 8) * 8
    while tile >= 8:
        if t % tile == 0:
            return tile
        tile -= 8
    return t


def _choose_row_tile(rows, cap):
    """(tile, pad): multiple-of-8 divisor if possible, else pad rows to a tile multiple."""
    c = max(8, min(cap, rows))
    tile = (c // 8) * 8
    while tile >= 8:
        if rows % tile == 0:
            return tile, 0
        tile -= 8
    tile = max(8, (c // 8) * 8)
    pad = (-rows) % tile
    return tile, pad


def _choose_f_tile(f):
    if f <= 1024:
        return f
    t = 512
    while t >= 128:
        if f % t == 0:
            return t
        t -= 128
    return f


def _prep_mask(m):
    m = jnp.asarray(m, jnp.float32)
    if m.ndim == 4:            # (B, 1, T, S) head-broadcast form
        m = m[:, 0]
    if m.ndim == 2:
        m = m[None]
    return m                   # ((1|B), (1|T), S_kv); value != 0 => attend


# ------------------------------ Pallas kernels ------------------------------ #

def kv_proj_kernel(*refs, eps, apply_ln):
    """Row-tiled K/V projection.  apply_ln=True -> project LayerNorm(x) (self-attn);
    apply_ln=False -> project the encoder memory directly (src-attn)."""
    if apply_ln:
        x_ref, g_ref, b_ref, wk_ref, bk_ref, wv_ref, bv_ref, k_ref, v_ref = refs
    else:
        x_ref, wk_ref, bk_ref, wv_ref, bv_ref, k_ref, v_ref = refs

    x = x_ref[...].astype(jnp.float32)
    src = _layernorm(x, g_ref[...], b_ref[...], eps) if apply_ln else x
    src = src.astype(jnp.bfloat16)
    k = jnp.dot(src, wk_ref[...], preferred_element_type=jnp.float32) + bk_ref[...]
    v = jnp.dot(src, wv_ref[...], preferred_element_type=jnp.float32) + bv_ref[...]
    k_ref[...] = k.astype(k_ref.dtype)
    v_ref[...] = v.astype(v_ref.dtype)


def attn_kernel(x_ref, k_ref, v_ref, mask_ref, g_ref, b_ref,
                wq_ref, bq_ref, wo_ref, bo_ref, o_ref, *, num_heads, eps):
    """Pre-norm residual multi-head attention for one (TQ, D) query tile.

    K/V arrive lane-dense as (1, S, D) bf16; head split / concat are value-level
    lane slices (no scratch round-trips)."""
    H = num_heads
    TQ, D = x_ref.shape[1], x_ref.shape[2]
    S = k_ref.shape[1]
    dk = D // H

    x = x_ref[0].astype(jnp.float32)                                 # (TQ, D)
    nq = _layernorm(x, g_ref[...], b_ref[...], eps)
    q = jnp.dot(nq.astype(jnp.bfloat16), wq_ref[...],
                preferred_element_type=jnp.float32) + bq_ref[...]    # (TQ, D) f32
    qb = (q * (1.0 / math.sqrt(dk))).astype(jnp.bfloat16)            # fold scale into q

    k = k_ref[0]                                                     # (S, D) bf16
    v = v_ref[0]
    qh = jnp.stack([qb[:, h * dk:(h + 1) * dk] for h in range(H)], axis=0)  # (H, TQ, dk)
    kh = jnp.stack([k[:, h * dk:(h + 1) * dk] for h in range(H)], axis=0)   # (H, S, dk)
    vh = jnp.stack([v[:, h * dk:(h + 1) * dk] for h in range(H)], axis=0)   # (H, S, dk)

    # Head-batched QK^T on the MXU: (H, TQ, dk) x (H, S, dk) -> (H, TQ, S)
    s = jax.lax.dot_general(qh, kh, (((2,), (2,)), ((0,), (0,))),
                            preferred_element_type=jnp.float32)

    bias = jnp.where(mask_ref[0] == 0.0, jnp.float32(-1e9), jnp.float32(0.0))
    bias = jnp.broadcast_to(bias, (TQ, S))                            # in-kernel broadcast
    s = s + bias[None, :, :]

    s = s - jnp.max(s, axis=-1, keepdims=True)
    p = jnp.exp(s)
    inv = pl.reciprocal(jnp.sum(p, axis=-1, keepdims=True), approx=False)

    # Head-batched PV: (H, TQ, S) x (H, S, dk) -> (H, TQ, dk)
    ctx = jax.lax.dot_general(p.astype(jnp.bfloat16), vh,
                              (((2,), (1,)), ((0,), (0,))),
                              preferred_element_type=jnp.float32)
    ctx = ctx * inv

    # Concatenate heads as a value and do ONE full-width output projection.
    cat = jnp.concatenate([ctx[h] for h in range(H)], axis=-1).astype(jnp.bfloat16)
    out = jnp.dot(cat, wo_ref[...], preferred_element_type=jnp.float32) + bo_ref[...]

    o_ref[0] = (x + out).astype(o_ref.dtype)                          # f32 residual add


def ffn_kernel(x_ref, g_ref, b_ref, w1_ref, b1_ref, w2_ref, b2_ref, *rest,
               eps, apply_final_ln):
    """Pre-norm residual FFN, tiled over d_ff (K axis) with an f32 accumulator.
    Optionally fuses the decoder's final LayerNorm into the epilogue."""
    if apply_final_ln:
        gf_ref, bf_ref, o_ref, nx_scr, acc_scr = rest
    else:
        o_ref, nx_scr, acc_scr = rest

    ki = pl.program_id(1)
    nk = pl.num_programs(1)

    @pl.when(ki == 0)
    def _():
        x = x_ref[...].astype(jnp.float32)
        nx_scr[...] = _layernorm(x, g_ref[...], b_ref[...], eps).astype(jnp.bfloat16)
        acc_scr[...] = jnp.zeros_like(acc_scr)

    h = jnp.dot(nx_scr[...], w1_ref[...],
                preferred_element_type=jnp.float32) + b1_ref[...]
    h = jnp.maximum(h, 0.0)
    acc_scr[...] += jnp.dot(h.astype(jnp.bfloat16), w2_ref[...],
                            preferred_element_type=jnp.float32)

    @pl.when(ki == nk - 1)
    def _():
        y = x_ref[...].astype(jnp.float32) + acc_scr[...] + b2_ref[...]
        if apply_final_ln:
            y = _layernorm(y, gf_ref[...], bf_ref[...], eps)
        o_ref[...] = y.astype(o_ref.dtype)


# ------------------------------ pallas_call glue ---------------------------- #

def _kv_projection(src, wk, bk, wv, bv, ln=None, *, eps=EPS):
    """Project K/V to lane-dense (B, S, D) bf16 arrays (row-tiled, 'parallel')."""
    B, S, D = src.shape
    rows = B * S
    cfg = _hw_config()
    TM, pad = _choose_row_tile(rows, cfg["row_cap"])
    s2 = src.reshape(rows, D)
    if pad:
        s2 = jnp.concatenate([s2, jnp.zeros((pad, D), s2.dtype)], axis=0)
    rows_p = rows + pad

    apply_ln = ln is not None
    inputs = [s2]
    in_specs = [pl.BlockSpec((TM, D), lambda i: (i, 0))]
    if apply_ln:
        g, b = ln
        inputs += [g, b]
        in_specs += [_const_spec(g.shape), _const_spec(b.shape)]
    inputs += [wk, bk, wv, bv]
    in_specs += [_const_spec(wk.shape), _const_spec(bk.shape),
                 _const_spec(wv.shape), _const_spec(bv.shape)]

    kern = functools.partial(kv_proj_kernel, eps=eps, apply_ln=apply_ln)
    k2, v2 = pl.pallas_call(
        kern,
        out_shape=(jax.ShapeDtypeStruct((rows_p, D), jnp.bfloat16),
                   jax.ShapeDtypeStruct((rows_p, D), jnp.bfloat16)),
        grid=(rows_p // TM,),
        in_specs=in_specs,
        out_specs=(pl.BlockSpec((TM, D), lambda i: (i, 0)),
                   pl.BlockSpec((TM, D), lambda i: (i, 0))),
        compiler_params=_compiler_params(("parallel",)),
    )(*inputs)
    if pad:
        k2, v2 = k2[:rows], v2[:rows]
    return k2.reshape(B, S, D), v2.reshape(B, S, D)


def _attention(x, k, v, mask, g, b, wq, bq, wo, bo, *, num_heads, eps=EPS):
    B, T, D = x.shape
    S = k.shape[1]
    cfg = _hw_config()
    TQ = _choose_q_tile(T, cfg["q_cap"])
    nq = T // TQ

    mB, mT = mask.shape[0], mask.shape[1]
    per_row = (mT == T)
    mrows = TQ if per_row else 1

    def mask_map(bb, qq):
        return (bb if mB > 1 else 0, qq if per_row else 0, 0)

    kern = functools.partial(attn_kernel, num_heads=num_heads, eps=eps)
    return pl.pallas_call(
        kern,
        out_shape=jax.ShapeDtypeStruct((B, T, D), x.dtype),
        grid=(B, nq),
        in_specs=[
            pl.BlockSpec((1, TQ, D), lambda bb, qq: (bb, qq, 0)),   # query tile
            pl.BlockSpec((1, S, D), lambda bb, qq: (bb, 0, 0)),     # K (lane-dense)
            pl.BlockSpec((1, S, D), lambda bb, qq: (bb, 0, 0)),     # V (lane-dense)
            pl.BlockSpec((1, mrows, S), mask_map),                  # compact mask block
            _const_spec(g.shape), _const_spec(b.shape),
            _const_spec(wq.shape), _const_spec(bq.shape),
            _const_spec(wo.shape), _const_spec(bo.shape),
        ],
        out_specs=pl.BlockSpec((1, TQ, D), lambda bb, qq: (bb, qq, 0)),
        compiler_params=_compiler_params(("parallel", "parallel")),
    )(x, k, v, mask, g, b, wq, bq, wo, bo)


def self_attn_sublayer(x, mask, p, *, num_heads, eps=EPS):
    g, b, wq, bq, wk, bk, wv, bv, wo, bo = p
    # K/V projected from LayerNorm(x) by a separate row-tiled kernel (hoisted).
    k, v = _kv_projection(x, wk, bk, wv, bv, ln=(g, b), eps=eps)
    return _attention(x, k, v, mask, g, b, wq, bq, wo, bo,
                      num_heads=num_heads, eps=eps)


def src_attn_sublayer(x, memory, mask, p, *, num_heads, eps=EPS):
    g, b, wq, bq, wk, bk, wv, bv, wo, bo = p
    # K/V projected from the encoder memory (no LayerNorm on memory).
    k, v = _kv_projection(memory, wk, bk, wv, bv, ln=None, eps=eps)
    return _attention(x, k, v, mask, g, b, wq, bq, wo, bo,
                      num_heads=num_heads, eps=eps)


def ffn_sublayer(x, p, *, eps=EPS, final_ln=None, out_dtype=None):
    B, T, D = x.shape
    g, b, w1, b1, w2, b2 = p
    F = w1.shape[1]
    out_dtype = out_dtype or x.dtype
    cfg = _hw_config()

    rows = B * T
    x2 = x.reshape(rows, D)
    TM, pad = _choose_row_tile(rows, cfg["row_cap"])
    if pad:
        x2 = jnp.concatenate([x2, jnp.zeros((pad, D), x2.dtype)], axis=0)
    rows_p = rows + pad

    FK = _choose_f_tile(F)
    nk = F // FK

    apply_final = final_ln is not None
    inputs = [x2, g, b, w1, b1, w2, b2]
    in_specs = [
        pl.BlockSpec((TM, D), lambda i, k: (i, 0)),
        _const_spec(g.shape), _const_spec(b.shape),
        pl.BlockSpec((D, FK), lambda i, k: (0, k)),
        pl.BlockSpec((1, FK), lambda i, k: (0, k)),
        pl.BlockSpec((FK, D), lambda i, k: (k, 0)),
        _const_spec(b2.shape),
    ]
    if apply_final:
        gf, bf = final_ln
        inputs += [gf, bf]
        in_specs += [_const_spec(gf.shape), _const_spec(bf.shape)]

    kern = functools.partial(ffn_kernel, eps=eps, apply_final_ln=apply_final)
    y = pl.pallas_call(
        kern,
        out_shape=jax.ShapeDtypeStruct((rows_p, D), out_dtype),
        grid=(rows_p // TM, nk),
        in_specs=in_specs,
        out_specs=pl.BlockSpec((TM, D), lambda i, k: (i, 0)),
        scratch_shapes=[pltpu.VMEM((TM, D), jnp.bfloat16),   # LayerNorm(x) cache
                        pltpu.VMEM((TM, D), jnp.float32)],   # d_ff accumulator
        compiler_params=_compiler_params(("parallel", "arbitrary")),
    )(*inputs)
    if pad:
        y = y[:rows]
    return y.reshape(B, T, D)


def decoder_forward(x, memory, src_mask, tgt_mask, params, *, num_heads, eps=EPS,
                    out_dtype=None):
    """Decoder.forward(x, memory, src_mask, tgt_mask) with N layers + final LayerNorm."""
    out_dtype = out_dtype or x.dtype
    tgt_m = _prep_mask(tgt_mask)      # ((1|B), (1|T), T), broadcast in-kernel
    src_m = _prep_mask(src_mask)      # ((1|B), (1|T), S), broadcast in-kernel

    xb = x.astype(jnp.bfloat16)       # bf16 residual stream between kernels
    memb = memory.astype(jnp.bfloat16)

    layers = params["layers"]
    n = len(layers)
    for li, lp in enumerate(layers):
        xb = self_attn_sublayer(xb, tgt_m, lp["self_attn"], num_heads=num_heads, eps=eps)
        xb = src_attn_sublayer(xb, memb, src_m, lp["src_attn"], num_heads=num_heads, eps=eps)
        last = (li == n - 1)
        xb = ffn_sublayer(xb, lp["ffn"], eps=eps,
                          final_ln=(params["norm"] if last else None),
                          out_dtype=(out_dtype if last else jnp.bfloat16))
    return xb


# ------------------------------ parameter init ------------------------------ #

def init_params(key, *, n_layers, d_model, d_ff):
    """Weights stored in bf16 once (MXU operands); biases / LayerNorm params in f32."""
    def lin(k, din, dout):
        kw, kb = jax.random.split(k)
        w = (jax.random.normal(kw, (din, dout), jnp.float32) * 0.05).astype(jnp.bfloat16)
        b = jax.random.normal(kb, (1, dout), jnp.float32) * 0.05
        return w, b

    def ln():
        return (jnp.ones((1, d_model), jnp.float32),
                jnp.zeros((1, d_model), jnp.float32))

    keys = iter(jax.random.split(key, n_layers * 10 + 1))
    layers = []
    for _ in range(n_layers):
        g0, b0 = ln()
        wq, bq = lin(next(keys), d_model, d_model)
        wk, bk = lin(next(keys), d_model, d_model)
        wv, bv = lin(next(keys), d_model, d_model)
        wo, bo = lin(next(keys), d_model, d_model)
        self_attn = (g0, b0, wq, bq, wk, bk, wv, bv, wo, bo)
        g1, b1 = ln()
        wq2, bq2 = lin(next(keys), d_model, d_model)
        wk2, bk2 = lin(next(keys), d_model, d_model)
        wv2, bv2 = lin(next(keys), d_model, d_model)
        wo2, bo2 = lin(next(keys), d_model, d_model)
        src_attn = (g1, b1, wq2, bq2, wk2, bk2, wv2, bv2, wo2, bo2)
        g2, b2 = ln()
        w1, bb1 = lin(next(keys), d_model, d_ff)
        w2, bb2 = lin(next(keys), d_ff, d_model)
        ffn = (g2, b2, w1, bb1, w2, bb2)
        layers.append({"self_attn": self_attn, "src_attn": src_attn, "ffn": ffn})
    return {"layers": layers, "norm": ln()}


if __name__ == "__main__":
    # Small, lane-aligned shapes: dk = D // H = 128 keeps every head slice full-width.
    B, T, S, D, H, F, N = 2, 8, 16, 256, 2, 512, 2
    key = jax.random.PRNGKey(0)
    kx, km, kp = jax.random.split(key, 3)
    x = jax.random.normal(kx, (B, T, D), jnp.float32)
    memory = jax.random.normal(km, (B, S, D), jnp.float32)
    # Causal (subsequent) target mask; per-batch src padding mask (batch 1 pads last 4).
    tgt_mask = jnp.tril(jnp.ones((1, T, T), jnp.float32))
    src_mask = jnp.ones((B, 1, S), jnp.float32).at[1, 0, S - 4:].set(0.0)

    params = init_params(kp, n_layers=N, d_model=D, d_ff=F)
    out = decoder_forward(x, memory, src_mask, tgt_mask, params, num_heads=H)
    out = jax.block_until_ready(out)
    assert out.shape == (B, T, D) and out.dtype == jnp.float32
    assert bool(jnp.all(jnp.isfinite(out)))
    print("KERNEL_OK")
</pallas_src>

<mosaic_0001>
module attributes {stable_mosaic.version = 11 : i64} {
  func.func @_probe(%arg0: i32, %arg1: memref<8x128xf32, #tpu.memory_space<vmem>>, %arg2: memref<8x128xf32, #tpu.memory_space<vmem>>) attributes {dimension_semantics = [#tpu.dimension_semantics<arbitrary>], iteration_bounds = array<i64: 1>, scalar_prefetch = 0 : i64, scratch_operands = 0 : i64, tpu.core_type = #tpu.core_type<tc>, window_params = [{pipeline_mode = #tpu.pipeline_mode<synchronous>, transform_indices = @transform_0, window_bounds = array<i64: 8, 128>}, {pipeline_mode = #tpu.pipeline_mode<synchronous>, transform_indices = @transform_1, window_bounds = array<i64: 8, 128>}]} {
    %c0 = arith.constant 0 : index
    %c0_0 = arith.constant 0 : index
    %0 = vector.load %arg1[%c0, %c0_0] : memref<8x128xf32, #tpu.memory_space<vmem>>, vector<8x128xf32>
    %c0_1 = arith.constant 0 : index
    %c0_2 = arith.constant 0 : index
    %1 = vector.load %arg2[%c0_1, %c0_2] : memref<8x128xf32, #tpu.memory_space<vmem>>, vector<8x128xf32>
    tpu.vector_store %arg2[%c0_1, %c0_2], %0 {strides = array<i32>} : memref<8x128xf32, #tpu.memory_space<vmem>>, vector<8x128xf32>,
    return
  }
  func.func @transform_0(%arg0: i32) -> (i32, i32) {
    %c0_i32 = arith.constant 0 : i32
    %c0_i32_0 = arith.constant 0 : i32
    %c0_i32_1 = arith.constant 0 : i32
    return %c0_i32, %c0_i32_0 : i32, i32
  }
  func.func @transform_1(%arg0: i32) -> (i32, i32) {
    %c0_i32 = arith.constant 0 : i32
    %c0_i32_0 = arith.constant 0 : i32
    %c0_i32_1 = arith.constant 0 : i32
    return %c0_i32, %c0_i32_0 : i32, i32
  }
}

module attributes {stable_mosaic.version = 11 : i64} {
  func.func @kv_proj_kernel(%arg0: i32, %arg1: memref<16x256xbf16, #tpu.memory_space<vmem>>, %arg2: memref<1x256xf32, #tpu.memory_space<vmem>>, %arg3: memref<1x256xf32, #tpu.memory_space<vmem>>, %arg4: memref<256x256xbf16, #tpu.memory_space<vmem>>, %arg5: memref<1x256xf32, #tpu.memory_space<vmem>>, %arg6: memref<256x256xbf16, #tpu.memory_space<vmem>>, %arg7: memref<1x256xf32, #tpu.memory_space<vmem>>, %arg8: memref<16x256xbf16, #tpu.memory_space<vmem>>, %arg9: memref<16x256xbf16, #tpu.memory_space<vmem>>) attributes {dimension_semantics = [#tpu.dimension_semantics<parallel>], iteration_bounds = array<i64: 1>, scalar_prefetch = 0 : i64, scratch_operands = 0 : i64, tpu.core_type = #tpu.core_type<tc>, window_params = [{transform_indices = @transform_0, window_bounds = array<i64: 16, 256>}, {pipeline_mode = #tpu.pipeline_mode<synchronous>, transform_indices = @transform_1, window_bounds = array<i64: 1, 256>}, {pipeline_mode = #tpu.pipeline_mode<synchronous>, transform_indices = @transform_2, window_bounds = array<i64: 1, 256>}, {pipeline_mode = #tpu.pipeline_mode<synchronous>, transform_indices = @transform_3, window_bounds = array<i64: 256, 256>}, {pipeline_mode = #tpu.pipeline_mode<synchronous>, transform_indices = @transform_4, window_bounds = array<i64: 1, 256>}, {pipeline_mode = #tpu.pipeline_mode<synchronous>, transform_indices = @transform_5, window_bounds = array<i64: 256, 256>}, {pipeline_mode = #tpu.pipeline_mode<synchronous>, transform_indices = @transform_6, window_bounds = array<i64: 1, 256>}, {transform_indices = @transform_7, window_bounds = array<i64: 16, 256>}, {transform_indices = @transform_8, window_bounds = array<i64: 16, 256>}]} {
    %c0 = arith.constant 0 : index
    %c0_0 = arith.constant 0 : index
    %0 = vector.load %arg1[%c0, %c0_0] : memref<16x256xbf16, #tpu.memory_space<vmem>>, vector<16x256xbf16>
    %1 = arith.extf %0 : vector<16x256xbf16> to vector<16x256xf32>
    %c0_1 = arith.constant 0 : index
    %c0_2 = arith.constant 0 : index
    %2 = vector.load %arg2[%c0_1, %c0_2] : memref<1x256xf32, #tpu.memory_space<vmem>>, vector<1x256xf32>
    %c0_3 = arith.constant 0 : index
    %c0_4 = arith.constant 0 : index
    %3 = vector.load %arg3[%c0_3, %c0_4] : memref<1x256xf32, #tpu.memory_space<vmem>>, vector<1x256xf32>
    %cst = arith.constant dense<0.000000e+00> : vector<16xf32>
    %4 = vector.multi_reduction <add>, %1, %cst [1] : vector<16x256xf32> to vector<16xf32>
    %5 = vector.shape_cast %4 : vector<16xf32> to vector<16x1xf32>
    %cst_5 = arith.constant 2.560000e+02 : f32
    %6 = vector.broadcast %cst_5 : f32 to vector<16x1xf32>
    %7 = arith.divf %5, %6 : vector<16x1xf32>
    %8 = vector.broadcast %7 : vector<16x1xf32> to vector<16x256xf32>
    %9 = arith.subf %1, %8 : vector<16x256xf32>
    %10 = arith.mulf %9, %9 : vector<16x256xf32>
    %cst_6 = arith.constant dense<0.000000e+00> : vector<16xf32>
    %11 = vector.multi_reduction <add>, %10, %cst_6 [1] : vector<16x256xf32> to vector<16xf32>
    %12 = vector.shape_cast %11 : vector<16xf32> to vector<16x1xf32>
    %cst_7 = arith.constant 2.550000e+02 : f32
    %13 = vector.broadcast %cst_7 : f32 to vector<16x1xf32>
    %14 = arith.divf %12, %13 : vector<16x1xf32>
    %15 = math.sqrt %14 : vector<16x1xf32>
    %16 = vector.broadcast %7 : vector<16x1xf32> to vector<16x256xf32>
    %17 = arith.subf %1, %16 : vector<16x256xf32>
    %18 = vector.broadcast %2 : vector<1x256xf32> to vector<16x256xf32>
    %19 = arith.mulf %18, %17 : vector<16x256xf32>
    %cst_8 = arith.constant 9.99999997E-7 : f32
    %20 = vector.broadcast %cst_8 : f32 to vector<16x1xf32>
    %21 = arith.addf %15, %20 : vector<16x1xf32>
    %22 = vector.broadcast %21 : vector<16x1xf32> to vector<16x256xf32>
    %23 = arith.divf %19, %22 : vector<16x256xf32>
    %24 = vector.broadcast %3 : vector<1x256xf32> to vector<16x256xf32>
    %25 = arith.addf %23, %24 : vector<16x256xf32>
    %26 = arith.truncf %25 : vector<16x256xf32> to vector<16x256xbf16>
    %c0_9 = arith.constant 0 : index
    %c0_10 = arith.constant 0 : index
    %27 = vector.load %arg4[%c0_9, %c0_10] : memref<256x256xbf16, #tpu.memory_space<vmem>>, vector<256x256xbf16>
    %cst_11 = arith.constant dense<0.000000e+00> : vector<16x256xf32>
    %28 = tpu.matmul %26, %27, %cst_11 {dimension_numbers = #tpu.dot_dimension_numbers<[1], [0], [0], [1], [0, 0, 1, 1], [], []>} : vector<16x256xbf16>, vector<256x256xbf16>, vector<16x256xf32> -> vector<16x256xf32>
    %c0_12 = arith.constant 0 : index
    %c0_13 = arith.constant 0 : index
    %29 = vector.load %arg5[%c0_12, %c0_13] : memref<1x256xf32, #tpu.memory_space<vmem>>, vector<1x256xf32>
    %30 = vector.broadcast %29 : vector<1x256xf32> to vector<16x256xf32>
    %31 = arith.addf %28, %30 : vector<16x256xf32>
    %c0_14 = arith.constant 0 : index
    %c0_15 = arith.constant 0 : index
    %32 = vector.load %arg6[%c0_14, %c0_15] : memref<256x256xbf16, #tpu.memory_space<vmem>>, vector<256x256xbf16>
    %cst_16 = arith.constant dense<0.000000e+00> : vector<16x256xf32>
    %33 = tpu.matmul %26, %32, %cst_16 {dimension_numbers = #tpu.dot_dimension_numbers<[1], [0], [0], [1], [0, 0, 1, 1], [], []>} : vector<16x256xbf16>, vector<256x256xbf16>, vector<16x256xf32> -> vector<16x256xf32>
    %c0_17 = arith.constant 0 : index
    %c0_18 = arith.constant 0 : index
    %34 = vector.load %arg7[%c0_17, %c0_18] : memref<1x256xf32, #tpu.memory_space<vmem>>, vector<1x256xf32>
    %35 = vector.broadcast %34 : vector<1x256xf32> to vector<16x256xf32>
    %36 = arith.addf %33, %35 : vector<16x256xf32>
    %37 = arith.truncf %31 : vector<16x256xf32> to vector<16x256xbf16>
    %c0_19 = arith.constant 0 : index
    %c0_20 = arith.constant 0 : index
    %38 = vector.load %arg8[%c0_19, %c0_20] : memref<16x256xbf16, #tpu.memory_space<vmem>>, vector<16x256xbf16>
    tpu.vector_store %arg8[%c0_19, %c0_20], %37 {strides = array<i32>} : memref<16x256xbf16, #tpu.memory_space<vmem>>, vector<16x256xbf16>,
    %39 = arith.truncf %36 : vector<16x256xf32> to vector<16x256xbf16>
    %c0_21 = arith.constant 0 : index
    %c0_22 = arith.constant 0 : index
    %40 = vector.load %arg9[%c0_21, %c0_22] : memref<16x256xbf16, #tpu.memory_space<vmem>>, vector<16x256xbf16>
    tpu.vector_store %arg9[%c0_21, %c0_22], %39 {strides = array<i32>} : memref<16x256xbf16, #tpu.memory_space<vmem>>, vector<16x256xbf16>,
    return
  }
  func.func @transform_0(%arg0: i32) -> (i32, i32) {
    %c0_i32 = arith.constant 0 : i32
    %c0_i32_0 = arith.constant 0 : i32
    return %arg0, %c0_i32 : i32, i32
  }
  func.func @transform_1(%arg0: i32) -> (i32, i32) {
    %c0_i32 = arith.constant 0 : i32
    %c0_i32_0 = arith.constant 0 : i32
    %c0_i32_1 = arith.constant 0 : i32
    return %c0_i32, %c0_i32_0 : i32, i32
  }
  func.func @transform_2(%arg0: i32) -> (i32, i32) {
    %c0_i32 = arith.constant 0 : i32
    %c0_i32_0 = arith.constant 0 : i32
    %c0_i32_1 = arith.constant 0 : i32
    return %c0_i32, %c0_i32_0 : i32, i32
  }
  func.func @transform_3(%arg0: i32) -> (i32, i32) {
    %c0_i32 = arith.constant 0 : i32
    %c0_i32_0 = arith.constant 0 : i32
    %c0_i32_1 = arith.constant 0 : i32
    return %c0_i32, %c0_i32_0 : i32, i32
  }
  func.func @transform_4(%arg0: i32) -> (i32, i32) {
    %c0_i32 = arith.constant 0 : i32
    %c0_i32_0 = arith.constant 0 : i32
    %c0_i32_1 = arith.constant 0 : i32
    return %c0_i32, %c0_i32_0 : i32, i32
  }
  func.func @transform_5(%arg0: i32) -> (i32, i32) {
    %c0_i32 = arith.constant 0 : i32
    %c0_i32_0 = arith.constant 0 : i32
    %c0_i32_1 = arith.constant 0 : i32
    return %c0_i32, %c0_i32_0 : i32, i32
  }
  func.func @transform_6(%arg0: i32) -> (i32, i32) {
    %c0_i32 = arith.constant 0 : i32
    %c0_i32_0 = arith.constant 0 : i32
    %c0_i32_1 = arith.constant 0 : i32
    return %c0_i32, %c0_i32_0 : i32, i32
  }
  func.func @transform_7(%arg0: i32) -> (i32, i32) {
    %c0_i32 = arith.constant 0 : i32
    %c0_i32_0 = arith.constant 0 : i32
    return %arg0, %c0_i32 : i32, i32
  }
  func.func @transform_8(%arg0: i32) -> (i32, i32) {
    %c0_i32 = arith.constant 0 : i32
    %c0_i32_0 = arith.constant 0 : i32
    return %arg0, %c0_i32 : i32, i32
  }
}

</mosaic_0001>

<llo_original>
// kernel: tpu_custom_call.1
$region0: #{tpu_custom_call.1}
  #allocation0 [shape = 'u32[]', space=smem, size = 0x4, offset = 0x4, fixed_abs, tag = 'smem constant byte address 0x4 - core index']
  #allocation1 [shape = 'u32[72,128]{1,0:T(1,128)}', space=vmem, size = 0x9000, scoped, tag = 'internal scratch']
  %s0 = inlined_call_operand.hbm [shape: f32[8,128], index: 0, kind: input, shape index: {}]
  %s1 = inlined_call_operand.hbm [shape: f32[8,128], index: 1, kind: output, shape index: {}]
  %s2 = sld [smem:[#allocation0]]
  $region18: #{tpu_custom_call.1} parent=0
    _
  %s4 = ssub.s32 1, %s2
  %s5 = scalar_select 0, %s4, %s2
  $region1: #{tpu_custom_call.1} parent=0
    #allocation2 [shape = 'u8[4096]{0}', space=vmem, size = 0x1000, scoped, tag = 'input window, operand 0, single buffered']
    #allocation3 [shape = 's32[1]{0}', space=sflag, size = 0x4, scoped, tag = 'scoped memory for tpu_custom_call.1']
    #allocation4 [shape = 's32[1]{0}', space=sflag, size = 0x4, scoped, tag = 'scoped memory for tpu_custom_call.1']
    #allocation5 [shape = 'u8[4096]{0}', space=vmem, size = 0x1000, scoped, tag = 'output window, operand 0, single buffered']
    %6 = vsyncpa [#allocation3], 0
    %7 = vsyncpa [#allocation4], 0
    // Predicated region
    $region2: #{tpu_custom_call.1} parent=1 // pred_check
      _
    $region3: #{tpu_custom_call.1} parent=1 // pred_check_branch
      %9 = sbr.rel (0) target = $region5
    $region4: #{tpu_custom_call.1} parent=1 // pred_region
      %11 = vsyncadd [#allocation3], 0
      %s13 = sshll.u32 %s0, 4
      %s14 = int_to_ptr.hbm [resolvable:$true] %s13
      %s15 = sshll.u32 [#allocation2], 4
      %s16 = int_to_ptr.vmem [resolvable:$true] %s15
      %18 = dma.hbm_to_vmem [thread:$0]  %s14, 128, %s16, [#allocation3]
    $region5: #{tpu_custom_call.1} parent=1 // pred_fallthru
      _
    // Predicated region
    $region6: #{tpu_custom_call.1} parent=1 // pred_check
      _
    $region7: #{tpu_custom_call.1} parent=1 // pred_check_branch
      %20 = sbr.rel (0) target = $region9
    $region8: #{tpu_custom_call.1} parent=1 // pred_region
      %22 = dma.done [#allocation3], 128
    $region9: #{tpu_custom_call.1} parent=1 // pred_fallthru
      _
    %v23 = vld [vmem:[#allocation2] sm:$0xff]
    %24 = vst [vmem:[#allocation5] sm:$0xff] %v23
    // Predicated region
    $region10: #{tpu_custom_call.1} parent=1 // pred_check
      _
    $region11: #{tpu_custom_call.1} parent=1 // pred_check_branch
      %26 = sbr.rel (0) target = $region13
    $region12: #{tpu_custom_call.1} parent=1 // pred_region
      %28 = vsyncadd [#allocation4], 0
      %s30 = sshll.u32 [#allocation5], 4
      %s31 = int_to_ptr.vmem [resolvable:$true] %s30
      %s32 = sshll.u32 %s1, 4
      %s33 = int_to_ptr.hbm [resolvable:$true] %s32
      %35 = dma.vmem_to_hbm [thread:$0]  %s31, 128, %s33, [#allocation4]
    $region13: #{tpu_custom_call.1} parent=1 // pred_fallthru
      _
    // Predicated region
    $region14: #{tpu_custom_call.1} parent=1 // pred_check
      _
    $region15: #{tpu_custom_call.1} parent=1 // pred_check_branch
      %37 = sbr.rel (0) target = $region17
    $region16: #{tpu_custom_call.1} parent=1 // pred_region
      %39 = dma.done [#allocation4], 128
    $region17: #{tpu_custom_call.1} parent=1 // pred_fallthru
      _
    %40 = vsyncpa [#allocation3], 1
    %41 = vsyncpa [#allocation4], 1

// kernel: tpu_custom_call.1
$region0: #{tpu_custom_call.1}
  #allocation0 [shape = 'u32[]', space=smem, size = 0x4, offset = 0x4, fixed_abs, tag = 'smem constant byte address 0x4 - core index']
  #allocation1 [shape = 'u32[72,128]{1,0:T(1,128)}', space=vmem, size = 0x9000, scoped, tag = 'internal scratch']
  %s0 = inlined_call_operand.hbm [shape: bf16[16,256], index: 0, kind: input, shape index: {}]
  %s1 = inlined_call_operand.hbm [shape: f32[1,256], index: 1, kind: input, shape index: {}]
  %s2 = inlined_call_operand.hbm [shape: f32[1,256], index: 2, kind: input, shape index: {}]
  %s3 = inlined_call_operand.hbm [shape: bf16[256,256], index: 3, kind: input, shape index: {}]
  %s4 = inlined_call_operand.vmem [shape: f32[1,256], index: 4, kind: input, shape index: {}]
  %s5 = inlined_call_operand.hbm [shape: bf16[256,256], index: 5, kind: input, shape index: {}]
  %s6 = inlined_call_operand.vmem [shape: f32[1,256], index: 6, kind: input, shape index: {}]
  %s7 = inlined_call_operand.hbm [shape: bf16[16,256], index: 7, kind: output, shape index: {0}]
  %s8 = inlined_call_operand.hbm [shape: bf16[16,256], index: 8, kind: output, shape index: {1}]
  %9 = xla_tuple %s7, %s8
  %s10 = sld [smem:[#allocation0]]
  $region66: #{tpu_custom_call.1} parent=0
    _
  %s12 = ssub.s32 1, %s10
  %s13 = scalar_select 0, %s12, %s10
  $region1: #{tpu_custom_call.1} parent=0
    #allocation2 [shape = 'u8[8192]{0}', space=vmem, size = 0x2000, scoped, tag = 'input window, operand 0, single buffered']
    #allocation3 [shape = 's32[1]{0}', space=sflag, size = 0x4, scoped, tag = 'scoped memory for tpu_custom_call.1']
    #allocation4 [shape = 's32[1]{0}', space=sflag, size = 0x4, scoped, tag = 'scoped memory for tpu_custom_call.1']
    #allocation5 [shape = 'u8[1024]{0}', space=vmem, size = 0x400, scoped, tag = 'input window, operand 1, single buffered']
    #allocation6 [shape = 's32[1]{0}', space=sflag, size = 0x4, scoped, tag = 'scoped memory for tpu_custom_call.1']
    #allocation7 [shape = 'u8[1024]{0}', space=vmem, size = 0x400, scoped, tag = 'input window, operand 2, single buffered']
    #allocation8 [shape = 'u8[131072]{0}', space=vmem, size = 0x20000, scoped, tag = 'input window, operand 3, single buffered']
    #allocation9 [shape = 's32[1]{0}', space=sflag, size = 0x4, scoped, tag = 'scoped memory for tpu_custom_call.1']
    #allocation10 [shape = 'u8[131072]{0}', space=vmem, size = 0x20000, scoped, tag = 'input window, operand 5, single buffered']
    #allocation11 [shape = 'u8[8192]{0}', space=vmem, size = 0x2000, scoped, tag = 'output window, operand 0, single buffered']
    #allocation12 [shape = 'u8[8192]{0}', space=vmem, size = 0x2000, scoped, tag = 'output window, operand 1, single buffered']
    #allocation13 [shape = 's32[1]{0}', space=sflag, size = 0x4, scoped, tag = 'scoped memory for tpu_custom_call.1']
    %14 = vsyncpa [#allocation3], 0
    %15 = vsyncpa [#allocation6], 0
    %16 = vsyncpa [#allocation9], 0
    %17 = vsyncpa [#allocation4], 0
    %18 = vsyncpa [#allocation13], 0
    // Predicated region
    $region2: #{tpu_custom_call.1} parent=1 // pred_check
      _
    $region3: #{tpu_custom_call.1} parent=1 // pred_check_branch
      %20 = sbr.rel (0) target = $region5
    $region4: #{tpu_custom_call.1} parent=1 // pred_region
      %22 = vsyncadd [#allocation3], 0
      %s23 = sshll.u32 %s0, 4
      %s24 = int_to_ptr.hbm [resolvable:$true] %s23
      %s25 = sshll.u32 [#allocation2], 4
      %s26 = int_to_ptr.vmem [resolvable:$true] %s25
      %31 = dma.hbm_to_vmem [thread:$0]  %s24, 256, %s26, [#allocation3], 128, 128, 8
    $region5: #{tpu_custom_call.1} parent=1 // pred_fallthru
      _
    // Predicated region
    $region6: #{tpu_custom_call.1} parent=1 // pred_check
      _
    $region7: #{tpu_custom_call.1} parent=1 // pred_check_branch
      %33 = sbr.rel (0) target = $region9
    $region8: #{tpu_custom_call.1} parent=1 // pred_region
      %35 = vsyncadd [#allocation6], 0
      %s37 = sshll.u32 %s1, 4
      %s38 = int_to_ptr.hbm [resolvable:$true] %s37
      %s39 = sshll.u32 [#allocation5], 4
      %s40 = int_to_ptr.vmem [resolvable:$true] %s39
      %42 = dma.hbm_to_vmem [thread:$0]  %s38, 32, %s40, [#allocation6]
    $region9: #{tpu_custom_call.1} parent=1 // pred_fallthru
      _
    // Predicated region
    $region10: #{tpu_custom_call.1} parent=1 // pred_check
      _
    $region11: #{tpu_custom_call.1} parent=1 // pred_check_branch
      %44 = sbr.rel (0) target = $region13
    $region12: #{tpu_custom_call.1} parent=1 // pred_region
      %46 = vsyncadd [#allocation6], 0
      %s48 = sshll.u32 %s2, 4
      %s49 = int_to_ptr.hbm [resolvable:$true] %s48
      %s50 = sshll.u32 [#allocation7], 4
      %s51 = int_to_ptr.vmem [resolvable:$true] %s50
      %53 = dma.hbm_to_vmem [thread:$0]  %s49, 32, %s51, [#allocation6]
    $region13: #{tpu_custom_call.1} parent=1 // pred_fallthru
      _
    // Predicated region
    $region14: #{tpu_custom_call.1} parent=1 // pred_check
      _
    $region15: #{tpu_custom_call.1} parent=1 // pred_check_branch
      %55 = sbr.rel (0) target = $region17
    $region16: #{tpu_custom_call.1} parent=1 // pred_region
      %57 = vsyncadd [#allocation9], 0
      %s58 = sshll.u32 %s3, 4
      %s59 = int_to_ptr.hbm [resolvable:$true] %s58
      %s60 = sshll.u32 [#allocation8], 4
      %s61 = int_to_ptr.vmem [resolvable:$true] %s60
      %66 = dma.hbm_to_vmem [thread:$0]  %s59, 4096, %s61, [#allocation9], 128, 128, 8
    $region17: #{tpu_custom_call.1} parent=1 // pred_fallthru
      _
    // Predicated region
    $region18: #{tpu_custom_call.1} parent=1 // pred_check
      _
    $region19: #{tpu_custom_call.1} parent=1 // pred_check_branch
      %68 = sbr.rel (0) target = $region21
    $region20: #{tpu_custom_call.1} parent=1 // pred_region
      _
    $region21: #{tpu_custom_call.1} parent=1 // pred_fallthru
      _
    // Predicated region
    $region22: #{tpu_custom_call.1} parent=1 // pred_check
      _
    $region23: #{tpu_custom_call.1} parent=1 // pred_check_branch
      %70 = sbr.rel (0) target = $region25
    $region24: #{tpu_custom_call.1} parent=1 // pred_region
      %72 = vsyncadd [#allocation9], 0
      %s73 = sshll.u32 %s5, 4
      %s74 = int_to_ptr.hbm [resolvable:$true] %s73
      %s75 = sshll.u32 [#allocation10], 4
      %s76 = int_to_ptr.vmem [resolvable:$true] %s75
      %81 = dma.hbm_to_vmem [thread:$0]  %s74, 4096, %s76, [#allocation9], 128, 128, 8
    $region25: #{tpu_custom_call.1} parent=1 // pred_fallthru
      _
    // Predicated region
    $region26: #{tpu_custom_call.1} parent=1 // pred_check
      _
    $region27: #{tpu_custom_call.1} parent=1 // pred_check_branch
      %83 = sbr.rel (0) target = $region29
    $region28: #{tpu_custom_call.1} parent=1 // pred_region
      _
    $region29: #{tpu_custom_call.1} parent=1 // pred_fallthru
      _
    // Predicated region
    $region30: #{tpu_custom_call.1} parent=1 // pred_check
      _
    $region31: #{tpu_custom_call.1} parent=1 // pred_check_branch
      %85 = sbr.rel (0) target = $region33
    $region32: #{tpu_custom_call.1} parent=1 // pred_region
      %87 = dma.done [#allocation3], 256
    $region33: #{tpu_custom_call.1} parent=1 // pred_fallthru
      _
    // Predicated region
    $region34: #{tpu_custom_call.1} parent=1 // pred_check
      _
    $region35: #{tpu_custom_call.1} parent=1 // pred_check_branch
      %89 = sbr.rel (0) target = $region37
    $region36: #{tpu_custom_call.1} parent=1 // pred_region
      %91 = dma.done [#allocation6], 32
    $region37: #{tpu_custom_call.1} parent=1 // pred_fallthru
      _
    // Predicated region
    $region38: #{tpu_custom_call.1} parent=1 // pred_check
      _
    $region39: #{tpu_custom_call.1} parent=1 // pred_check_branch
      %93 = sbr.rel (0) target = $region41
    $region40: #{tpu_custom_call.1} parent=1 // pred_region
      %95 = dma.done [#allocation6], 32
    $region41: #{tpu_custom_call.1} parent=1 // pred_fallthru
      _
    // Predicated region
    $region42: #{tpu_custom_call.1} parent=1 // pred_check
      _
    $region43: #{tpu_custom_call.1} parent=1 // pred_check_branch
      %97 = sbr.rel (0) target = $region45
    $region44: #{tpu_custom_call.1} parent=1 // pred_region
      %99 = dma.done [#allocation9], 4096
    $region45: #{tpu_custom_call.1} parent=1 // pred_fallthru
      _
    // Predicated region
    $region46: #{tpu_custom_call.1} parent=1 // pred_check
      _
    $region47: #{tpu_custom_call.1} parent=1 // pred_check_branch
      %101 = sbr.rel (0) target = $region49
    $region48: #{tpu_custom_call.1} parent=1 // pred_region
      %103 = dma.done [#allocation9], 4096
    $region49: #{tpu_custom_call.1} parent=1 // pred_fallthru
      _
    %v104 = vld [vmem:[#allocation2] sm:$0xff]
    %v105 = vld [vmem:[#allocation2 + $0x8] sm:$0xff]
    %v106 = vunpack.c.l.bf16 %v104
    %v107 = vunpack.c.h.bf16 %v104
    %v108 = vunpack.c.l.bf16 %v105
    %v109 = vunpack.c.h.bf16 %v105
    %v110 = vld [vmem:[#allocation5] sm:$0x3]
    %v111 = vld [vmem:[#allocation7] sm:$0x3]
    %v112 = vadd.f32 %v106, %v107
    %113 = vadd.xlane.f32.xlu0 %v112
    %v114 = vpop.xlane.xlu0 %113
    %v115 = vadd.f32 %v108, %v109
    %116 = vadd.xlane.f32.xlu0 %v115
    %v117 = vpop.xlane.xlu0 %116
    %v118 = vrcp.pop 256.0
    %v119 = vmul.f32 256.0, %v118
    %v120 = vsub.f32 1.0, %v119
    %v121 = vmul.f32 %v118, %v120
    %v122 = vadd.f32 %v118, %v121
    %vm123 = vweird.f32 %v118
    %v124 = vsel %vm123, %v118, %v122
    %v125 = vmul.f32 %v114, %v124
    %v126 = vmul.f32 %v117, %v124
    %v127 = vsub.f32 %v106, %v125
    %v128 = vsub.f32 %v107, %v125
    %v129 = vsub.f32 %v108, %v126
    %v130 = vsub.f32 %v109, %v126
    %v131 = vmul.f32 %v127, %v127
    %v132 = vmul.f32 %v128, %v128
    %v133 = vmul.f32 %v129, %v129
    %v134 = vmul.f32 %v130, %v130
    %v135 = vadd.f32 %v131, %v132
    %136 = vadd.xlane.f32.xlu0 %v135
    %v137 = vpop.xlane.xlu0 %136
    %v138 = vadd.f32 %v133, %v134
    %139 = vadd.xlane.f32.xlu0 %v138
    %v140 = vpop.xlane.xlu0 %139
    %v141 = vrcp.pop 255.0
    %v142 = vmul.f32 255.0, %v141
    %v143 = vsub.f32 1.0, %v142
    %v144 = vmul.f32 %v141, %v143
    %v145 = vadd.f32 %v141, %v144
    %vm146 = vweird.f32 %v141
    %v147 = vsel %vm146, %v141, %v145
    %v148 = vmul.f32 %v137, %v147
    %v149 = vmul.f32 %v140, %v147
    %v150 = vrsqrt.pop %v148
    %v151 = vmul.f32 %v150, %v148
    %v152 = vmul.f32 %v151, %v150
    %v153 = vmul.f32 0.5, %v152
    %v154 = vsub.f32 1.5, %v153
    %v155 = vmul.f32 %v150, %v154
    %v156 = vmul.f32 %v148, %v155
    %vm157 = vcmp.eq.f32.partialorder %v148, inf
    %v158 = vsel %vm157, %v148, %v156
    %vm159 = vcmp.eq.f32.partialorder %v148, 0.0
    %v160 = vand.u32 %v148, 2147483648
    %v161 = vsel %vm159, %v160, %v158
    %v162 = vrsqrt.pop %v149
    %v163 = vmul.f32 %v162, %v149
    %v164 = vmul.f32 %v163, %v162
    %v165 = vmul.f32 0.5, %v164
    %v166 = vsub.f32 1.5, %v165
    %v167 = vmul.f32 %v162, %v166
    %v168 = vmul.f32 %v149, %v167
    %vm169 = vcmp.eq.f32.partialorder %v149, inf
    %v170 = vsel %vm169, %v149, %v168
    %vm171 = vcmp.eq.f32.partialorder %v149, 0.0
    %v172 = vand.u32 %v149, 2147483648
    %v173 = vsel %vm171, %v172, %v170
    %v175 = vperm.slane %v110, 0
    %v176 = vperm.slane %v110, 1
    %v179 = vmul.f32 %v175, %v127
    %v180 = vmul.f32 %v176, %v128
    %v181 = vmul.f32 %v175, %v129
    %v182 = vmul.f32 %v176, %v130
    %v183 = vadd.f32 %v161, 1e-06
    %v184 = vadd.f32 %v173, 1e-06
    %v185 = vrcp.pop %v183
    %v186 = vmul.f32 %v183, %v185
    %v187 = vsub.f32 1.0, %v186
    %v188 = vmul.f32 %v185, %v187
    %v189 = vadd.f32 %v185, %v188
    %vm190 = vweird.f32 %v183
    %vm191 = vweird.f32 %v185
    %vm192 = vmor %vm190, %vm191
    %v193 = vsel %vm192, %v185, %v189
    %v194 = vand.u32 2147483647, %v183
    %vm195 = vcmp.eq.f32.partialorder %v194, 8.507059e+37
    %v196 = vand.u32 %v183, 2147483648
    %v197 = vor.u32 1.1754944e-38, %v196
    %v198 = vsel %vm195, %v197, %v193
    %v199 = vmul.f32 %v179, %v198
    %v200 = vmul.f32 %v180, %v198
    %v201 = vrcp.pop %v184
    %v202 = vmul.f32 %v184, %v201
    %v203 = vsub.f32 1.0, %v202
    %v204 = vmul.f32 %v201, %v203
    %v205 = vadd.f32 %v201, %v204
    %vm206 = vweird.f32 %v184
    %vm207 = vweird.f32 %v201
    %vm208 = vmor %vm206, %vm207
    %v209 = vsel %vm208, %v201, %v205
    %v210 = vand.u32 2147483647, %v184
    %vm211 = vcmp.eq.f32.partialorder %v210, 8.507059e+37
    %v212 = vand.u32 %v184, 2147483648
    %v213 = vor.u32 1.1754944e-38, %v212
    %v214 = vsel %vm211, %v213, %v209
    %v215 = vmul.f32 %v181, %v214
    %v216 = vmul.f32 %v182, %v214
    %v218 = vperm.slane %v111, 0
    %v219 = vperm.slane %v111, 1
    %v222 = vadd.f32 %v199, %v218
    %v223 = vadd.f32 %v200, %v219
    %v224 = vadd.f32 %v215, %v218
    %v225 = vadd.f32 %v216, %v219
    %v226 = vpack.c.bf16 %v224, %v222
    %v227 = vpack.c.bf16 %v225, %v223
    %v228 = vld [vmem:[#allocation8] sm:$0xff]
    %v229 = vld [vmem:[#allocation8 + $0x8] sm:$0xff]
    %v230 = vld [vmem:[#allocation8 + $0x10] sm:$0xff]
    %v231 = vld [vmem:[#allocation8 + $0x18] sm:$0xff]
    %v232 = vld [vmem:[#allocation8 + $0x20] sm:$0xff]
    %v233 = vld [vmem:[#allocation8 + $0x28] sm:$0xff]
    %v234 = vld [vmem:[#allocation8 + $0x30] sm:$0xff]
    %v235 = vld [vmem:[#allocation8 + $0x38] sm:$0xff]
    %v236 = vld [vmem:[#allocation8 + $0x40] sm:$0xff]
    %v237 = vld [vmem:[#allocation8 + $0x48] sm:$0xff]
    %v238 = vld [vmem:[#allocation8 + $0x50] sm:$0xff]
    %v239 = vld [vmem:[#allocation8 + $0x58] sm:$0xff]
    %v240 = vld [vmem:[#allocation8 + $0x60] sm:$0xff]
    %v241 = vld [vmem:[#allocation8 + $0x68] sm:$0xff]
    %v242 = vld [vmem:[#allocation8 + $0x70] sm:$0xff]
    %v243 = vld [vmem:[#allocation8 + $0x78] sm:$0xff]
    %v244 = vld [vmem:[#allocation8 + $0x80] sm:$0xff]
    %v245 = vld [vmem:[#allocation8 + $0x88] sm:$0xff]
    %v246 = vld [vmem:[#allocation8 + $0x90] sm:$0xff]
    %v247 = vld [vmem:[#allocation8 + $0x98] sm:$0xff]
    %v248 = vld [vmem:[#allocation8 + $0xa0] sm:$0xff]
    %v249 = vld [vmem:[#allocation8 + $0xa8] sm:$0xff]
    %v250 = vld [vmem:[#allocation8 + $0xb0] sm:$0xff]
    %v251 = vld [vmem:[#allocation8 + $0xb8] sm:$0xff]
    %v252 = vld [vmem:[#allocation8 + $0xc0] sm:$0xff]
    %v253 = vld [vmem:[#allocation8 + $0xc8] sm:$0xff]
    %v254 = vld [vmem:[#allocation8 + $0xd0] sm:$0xff]
    %v255 = vld [vmem:[#allocation8 + $0xd8] sm:$0xff]
    %v256 = vld [vmem:[#allocation8 + $0xe0] sm:$0xff]
    %v257 = vld [vmem:[#allocation8 + $0xe8] sm:$0xff]
    %v258 = vld [vmem:[#allocation8 + $0xf0] sm:$0xff]
    %v259 = vld [vmem:[#allocation8 + $0xf8] sm:$0xff]
    %v260 = vld [vmem:[%s4] sm:$0x3]
    %v262 = vperm.slane %v260, 0
    %v263 = vperm.slane %v260, 1
    %v298 = vunpack.c.l.b16 %v228
    %v299 = vunpack.c.h.b16 %v228
    %v300 = vunpack.c.l.b16 %v229
    %v301 = vunpack.c.h.b16 %v229
    %v302 = vunpack.c.l.b16 %v230
    %v303 = vunpack.c.h.b16 %v230
    %v304 = vunpack.c.l.b16 %v231
    %v305 = vunpack.c.h.b16 %v231
    %v306 = vunpack.c.l.b16 %v232
    %v307 = vunpack.c.h.b16 %v232
    %v308 = vunpack.c.l.b16 %v233
    %v309 = vunpack.c.h.b16 %v233
    %v310 = vunpack.c.l.b16 %v234
    %v311 = vunpack.c.h.b16 %v234
    %v312 = vunpack.c.l.b16 %v235
    %v313 = vunpack.c.h.b16 %v235
    %v314 = vunpack.c.l.b16 %v236
    %v315 = vunpack.c.h.b16 %v236
    %v316 = vunpack.c.l.b16 %v237
    %v317 = vunpack.c.h.b16 %v237
    %v318 = vunpack.c.l.b16 %v238
    %v319 = vunpack.c.h.b16 %v238
    %v320 = vunpack.c.l.b16 %v239
    %v321 = vunpack.c.h.b16 %v239
    %v322 = vunpack.c.l.b16 %v240
    %v323 = vunpack.c.h.b16 %v240
    %v324 = vunpack.c.l.b16 %v241
    %v325 = vunpack.c.h.b16 %v241
    %v326 = vunpack.c.l.b16 %v242
    %v327 = vunpack.c.h.b16 %v242
    %v328 = vunpack.c.l.b16 %v243
    %v329 = vunpack.c.h.b16 %v243
    %v330 = vunpack.c.l.b16 %v244
    %v331 = vunpack.c.h.b16 %v244
    %v332 = vunpack.c.l.b16 %v245
    %v333 = vunpack.c.h.b16 %v245
    %v334 = vunpack.c.l.b16 %v246
    %v335 = vunpack.c.h.b16 %v246
    %v336 = vunpack.c.l.b16 %v247
    %v337 = vunpack.c.h.b16 %v247
    %v338 = vunpack.c.l.b16 %v248
    %v339 = vunpack.c.h.b16 %v248
    %v340 = vunpack.c.l.b16 %v249
    %v341 = vunpack.c.h.b16 %v249
    %v342 = vunpack.c.l.b16 %v250
    %v343 = vunpack.c.h.b16 %v250
    %v344 = vunpack.c.l.b16 %v251
    %v345 = vunpack.c.h.b16 %v251
    %v346 = vunpack.c.l.b16 %v252
    %v347 = vunpack.c.h.b16 %v252
    %v348 = vunpack.c.l.b16 %v253
    %v349 = vunpack.c.h.b16 %v253
    %v350 = vunpack.c.l.b16 %v254
    %v351 = vunpack.c.h.b16 %v254
    %v352 = vunpack.c.l.b16 %v255
    %v353 = vunpack.c.h.b16 %v255
    %v354 = vunpack.c.l.b16 %v256
    %v355 = vunpack.c.h.b16 %v256
    %v356 = vunpack.c.l.b16 %v257
    %v357 = vunpack.c.h.b16 %v257
    %v358 = vunpack.c.l.b16 %v258
    %v359 = vunpack.c.h.b16 %v258
    %v360 = vunpack.c.l.b16 %v259
    %v361 = vunpack.c.h.b16 %v259
    %v362 = vpack.c.b16 %v300, %v298
    %v363 = vpack.c.b16 %v301, %v299
    %v364 = vpack.c.b16 %v304, %v302
    %v365 = vpack.c.b16 %v305, %v303
    %v366 = vpack.c.b16 %v308, %v306
    %v367 = vpack.c.b16 %v309, %v307
    %v368 = vpack.c.b16 %v312, %v310
    %v369 = vpack.c.b16 %v313, %v311
    %v370 = vpack.c.b16 %v316, %v314
    %v371 = vpack.c.b16 %v317, %v315
    %v372 = vpack.c.b16 %v320, %v318
    %v373 = vpack.c.b16 %v321, %v319
    %v374 = vpack.c.b16 %v324, %v322
    %v375 = vpack.c.b16 %v325, %v323
    %v376 = vpack.c.b16 %v328, %v326
    %v377 = vpack.c.b16 %v329, %v327
    %v378 = vpack.c.b16 %v332, %v330
    %v379 = vpack.c.b16 %v333, %v331
    %v380 = vpack.c.b16 %v336, %v334
    %v381 = vpack.c.b16 %v337, %v335
    %v382 = vpack.c.b16 %v340, %v338
    %v383 = vpack.c.b16 %v341, %v339
    %v384 = vpack.c.b16 %v344, %v342
    %v385 = vpack.c.b16 %v345, %v343
    %v386 = vpack.c.b16 %v348, %v346
    %v387 = vpack.c.b16 %v349, %v347
    %v388 = vpack.c.b16 %v352, %v350
    %v389 = vpack.c.b16 %v353, %v351
    %v390 = vpack.c.b16 %v356, %v354
    %v391 = vpack.c.b16 %v357, %v355
    %v392 = vpack.c.b16 %v360, %v358
    %v393 = vpack.c.b16 %v361, %v359
    %426 = vmatpush.bf16.msra.mxu0 %v376
    %427 = vmatpush.bf16.msra.mxu0 %v374
    %428 = vmatpush.bf16.msra.mxu0 %v372
    %429 = vmatpush.bf16.msra.mxu0 %v370
    %430 = vmatpush.bf16.msra.mxu0 %v368
    %431 = vmatpush.bf16.msra.mxu0 %v366
    %432 = vmatpush.bf16.msra.mxu0 %v364
    %433 = vmatpush.bf16.msra.mxu0 %v362
    %434 = vmatmul.bf16.gmra.mxu0 %v226
    %v435 = vpop.f32.mrf.mxu0
    %v436 = vadd.f32 %v262, %v435
    %v437 = vpop.f32.mrf.mxu0
    %v438 = vadd.f32 %v262, %v437
    %439 = vdwg.mxu0
    %440 = vmatpush.bf16.msra.mxu0 %v392
    %441 = vmatpush.bf16.msra.mxu0 %v390
    %442 = vmatpush.bf16.msra.mxu0 %v388
    %443 = vmatpush.bf16.msra.mxu0 %v386
    %444 = vmatpush.bf16.msra.mxu0 %v384
    %445 = vmatpush.bf16.msra.mxu0 %v382
    %446 = vmatpush.bf16.msra.mxu0 %v380
    %447 = vmatpush.bf16.msra.mxu0 %v378
    %448 = vmatmul.bf16.gmra.mxu0 %v227
    %v449 = vpop.f32.mrf.mxu0
    %v450 = vadd.f32 %v436, %v449
    %v451 = vpop.f32.mrf.mxu0
    %v452 = vadd.f32 %v438, %v451
    %453 = vdwg.mxu0
    %454 = vmatpush.bf16.msra.mxu0 %v377
    %455 = vmatpush.bf16.msra.mxu0 %v375
    %456 = vmatpush.bf16.msra.mxu0 %v373
    %457 = vmatpush.bf16.msra.mxu0 %v371
    %458 = vmatpush.bf16.msra.mxu0 %v369
    %459 = vmatpush.bf16.msra.mxu0 %v367
    %460 = vmatpush.bf16.msra.mxu0 %v365
    %461 = vmatpush.bf16.msra.mxu0 %v363
    %462 = vmatmul.bf16.gmra.mxu0 %v226
    %v463 = vpop.f32.mrf.mxu0
    %v464 = vadd.f32 %v263, %v463
    %v465 = vpop.f32.mrf.mxu0
    %v466 = vadd.f32 %v263, %v465
    %467 = vdwg.mxu0
    %468 = vmatpush.bf16.msra.mxu0 %v393
    %469 = vmatpush.bf16.msra.mxu0 %v391
    %470 = vmatpush.bf16.msra.mxu0 %v389
    %471 = vmatpush.bf16.msra.mxu0 %v387
    %472 = vmatpush.bf16.msra.mxu0 %v385
    %473 = vmatpush.bf16.msra.mxu0 %v383
    %474 = vmatpush.bf16.msra.mxu0 %v381
    %475 = vmatpush.bf16.msra.mxu0 %v379
    %476 = vmatmul.bf16.gmra.mxu0 %v227
    %v477 = vpop.f32.mrf.mxu0
    %v478 = vadd.f32 %v464, %v477
    %v479 = vpop.f32.mrf.mxu0
    %v480 = vadd.f32 %v466, %v479
    %481 = vdwg.mxu0
    %v482 = vld [vmem:[#allocation10] sm:$0xff]
    %v483 = vld [vmem:[#allocation10 + $0x8] sm:$0xff]
    %v484 = vld [vmem:[#allocation10 + $0x10] sm:$0xff]
    %v485 = vld [vmem:[#allocation10 + $0x18] sm:$0xff]
    %v486 = vld [vmem:[#allocation10 + $0x20] sm:$0xff]
    %v487 = vld [vmem:[#allocation10 + $0x28] sm:$0xff]
    %v488 = vld [vmem:[#allocation10 + $0x30] sm:$0xff]
    %v489 = vld [vmem:[#allocation10 + $0x38] sm:$0xff]
    %v490 = vld [vmem:[#allocation10 + $0x40] sm:$0xff]
    %v491 = vld [vmem:[#allocation10 + $0x48] sm:$0xff]
    %v492 = vld [vmem:[#allocation10 + $0x50] sm:$0xff]
    %v493 = vld [vmem:[#allocation10 + $0x58] sm:$0xff]
    %v494 = vld [vmem:[#allocation10 + $0x60] sm:$0xff]
    %v495 = vld [vmem:[#allocation10 + $0x68] sm:$0xff]
    %v496 = vld [vmem:[#allocation10 + $0x70] sm:$0xff]
    %v497 = vld [vmem:[#allocation10 + $0x78] sm:$0xff]
    %v498 = vld [vmem:[#allocation10 + $0x80] sm:$0xff]
    %v499 = vld [vmem:[#allocation10 + $0x88] sm:$0xff]
    %v500 = vld [vmem:[#allocation10 + $0x90] sm:$0xff]
    %v501 = vld [vmem:[#allocation10 + $0x98] sm:$0xff]
    %v502 = vld [vmem:[#allocation10 + $0xa0] sm:$0xff]
    %v503 = vld [vmem:[#allocation10 + $0xa8] sm:$0xff]
    %v504 = vld [vmem:[#allocation10 + $0xb0] sm:$0xff]
    %v505 = vld [vmem:[#allocation10 + $0xb8] sm:$0xff]
    %v506 = vld [vmem:[#allocation10 + $0xc0] sm:$0xff]
    %v507 = vld [vmem:[#allocation10 + $0xc8] sm:$0xff]
    %v508 = vld [vmem:[#allocation10 + $0xd0] sm:$0xff]
    %v509 = vld [vmem:[#allocation10 + $0xd8] sm:$0xff]
    %v510 = vld [vmem:[#allocation10 + $0xe0] sm:$0xff]
    %v511 = vld [vmem:[#allocation10 + $0xe8] sm:$0xff]
    %v512 = vld [vmem:[#allocation10 + $0xf0] sm:$0xff]
    %v513 = vld [vmem:[#allocation10 + $0xf8] sm:$0xff]
    %v514 = vld [vmem:[%s6] sm:$0x3]
    %v516 = vperm.slane %v514, 0
    %v517 = vperm.slane %v514, 1
    %v552 = vunpack.c.l.b16 %v482
    %v553 = vunpack.c.h.b16 %v482
    %v554 = vunpack.c.l.b16 %v483
    %v555 = vunpack.c.h.b16 %v483
    %v556 = vunpack.c.l.b16 %v484
    %v557 = vunpack.c.h.b16 %v484
    %v558 = vunpack.c.l.b16 %v485
    %v559 = vunpack.c.h.b16 %v485
    %v560 = vunpack.c.l.b16 %v486
    %v561 = vunpack.c.h.b16 %v486
    %v562 = vunpack.c.l.b16 %v487
    %v563 = vunpack.c.h.b16 %v487
    %v564 = vunpack.c.l.b16 %v488
    %v565 = vunpack.c.h.b16 %v488
    %v566 = vunpack.c.l.b16 %v489
    %v567 = vunpack.c.h.b16 %v489
    %v568 = vunpack.c.l.b16 %v490
    %v569 = vunpack.c.h.b16 %v490
    %v570 = vunpack.c.l.b16 %v491
    %v571 = vunpack.c.h.b16 %v491
    %v572 = vunpack.c.l.b16 %v492
    %v573 = vunpack.c.h.b16 %v492
    %v574 = vunpack.c.l.b16 %v493
    %v575 = vunpack.c.h.b16 %v493
    %v576 = vunpack.c.l.b16 %v494
    %v577 = vunpack.c.h.b16 %v494
    %v578 = vunpack.c.l.b16 %v495
    %v579 = vunpack.c.h.b16 %v495
    %v580 = vunpack.c.l.b16 %v496
    %v581 = vunpack.c.h.b16 %v496
    %v582 = vunpack.c.l.b16 %v497
    %v583 = vunpack.c.h.b16 %v497
    %v584 = vunpack.c.l.b16 %v498
    %v585 = vunpack.c.h.b16 %v498
    %v586 = vunpack.c.l.b16 %v499
    %v587 = vunpack.c.h.b16 %v499
    %v588 = vunpack.c.l.b16 %v500
    %v589 = vunpack.c.h.b16 %v500
    %v590 = vunpack.c.l.b16 %v501
    %v591 = vunpack.c.h.b16 %v501
    %v592 = vunpack.c.l.b16 %v502
    %v593 = vunpack.c.h.b16 %v502
    %v594 = vunpack.c.l.b16 %v503
    %v595 = vunpack.c.h.b16 %v503
    %v596 = vunpack.c.l.b16 %v504
    %v597 = vunpack.c.h.b16 %v504
    %v598 = vunpack.c.l.b16 %v505
    %v599 = vunpack.c.h.b16 %v505
    %v600 = vunpack.c.l.b16 %v506
    %v601 = vunpack.c.h.b16 %v506
    %v602 = vunpack.c.l.b16 %v507
    %v603 = vunpack.c.h.b16 %v507
    %v604 = vunpack.c.l.b16 %v508
    %v605 = vunpack.c.h.b16 %v508
    %v606 = vunpack.c.l.b16 %v509
    %v607 = vunpack.c.h.b16 %v509
    %v608 = vunpack.c.l.b16 %v510
    %v609 = vunpack.c.h.b16 %v510
    %v610 = vunpack.c.l.b16 %v511
    %v611 = vunpack.c.h.b16 %v511
    %v612 = vunpack.c.l.b16 %v512
    %v613 = vunpack.c.h.b16 %v512
    %v614 = vunpack.c.l.b16 %v513
    %v615 = vunpack.c.h.b16 %v513
    %v616 = vpack.c.b16 %v554, %v552
    %v617 = vpack.c.b16 %v555, %v553
    %v618 = vpack.c.b16 %v558, %v556
    %v619 = vpack.c.b16 %v559, %v557
    %v620 = vpack.c.b16 %v562, %v560
    %v621 = vpack.c.b16 %v563, %v561
    %v622 = vpack.c.b16 %v566, %v564
    %v623 = vpack.c.b16 %v567, %v565
    %v624 = vpack.c.b16 %v570, %v568
    %v625 = vpack.c.b16 %v571, %v569
    %v626 = vpack.c.b16 %v574, %v572
    %v627 = vpack.c.b16 %v575, %v573
    %v628 = vpack.c.b16 %v578, %v576
    %v629 = vpack.c.b16 %v579, %v577
    %v630 = vpack.c.b16 %v582, %v580
    %v631 = vpack.c.b16 %v583, %v581
    %v632 = vpack.c.b16 %v586, %v584
    %v633 = vpack.c.b16 %v587, %v585
    %v634 = vpack.c.b16 %v590, %v588
    %v635 = vpack.c.b16 %v591, %v589
    %v636 = vpack.c.b16 %v594, %v592
    %v637 = vpack.c.b16 %v595, %v593
    %v638 = vpack.c.b16 %v598, %v596
    %v639 = vpack.c.b16 %v599, %v597
    %v640 = vpack.c.b16 %v602, %v600
    %v641 = vpack.c.b16 %v603, %v601
    %v642 = vpack.c.b16 %v606, %v604
    %v643 = vpack.c.b16 %v607, %v605
    %v644 = vpack.c.b16 %v610, %v608
    %v645 = vpack.c.b16 %v611, %v609
    %v646 = vpack.c.b16 %v614, %v612
    %v647 = vpack.c.b16 %v615, %v613
    %680 = vmatpush.bf16.msra.mxu0 %v630
    %681 = vmatpush.bf16.msra.mxu0 %v628
    %682 = vmatpush.bf16.msra.mxu0 %v626
    %683 = vmatpush.bf16.msra.mxu0 %v624
    %684 = vmatpush.bf16.msra.mxu0 %v622
    %685 = vmatpush.bf16.msra.mxu0 %v620
    %686 = vmatpush.bf16.msra.mxu0 %v618
    %687 = vmatpush.bf16.msra.mxu0 %v616
    %688 = vmatmul.bf16.gmra.mxu0 %v226
    %v689 = vpop.f32.mrf.mxu0
    %v690 = vadd.f32 %v516, %v689
    %v691 = vpop.f32.mrf.mxu0
    %v692 = vadd.f32 %v516, %v691
    %693 = vdwg.mxu0
    %694 = vmatpush.bf16.msra.mxu0 %v646
    %695 = vmatpush.bf16.msra.mxu0 %v644
    %696 = vmatpush.bf16.msra.mxu0 %v642
    %697 = vmatpush.bf16.msra.mxu0 %v640
    %698 = vmatpush.bf16.msra.mxu0 %v638
    %699 = vmatpush.bf16.msra.mxu0 %v636
    %700 = vmatpush.bf16.msra.mxu0 %v634
    %701 = vmatpush.bf16.msra.mxu0 %v632
    %702 = vmatmul.bf16.gmra.mxu0 %v227
    %v703 = vpop.f32.mrf.mxu0
    %v704 = vadd.f32 %v690, %v703
    %v705 = vpop.f32.mrf.mxu0
    %v706 = vadd.f32 %v692, %v705
    %707 = vdwg.mxu0
    %708 = vmatpush.bf16.msra.mxu0 %v631
    %709 = vmatpush.bf16.msra.mxu0 %v629
    %710 = vmatpush.bf16.msra.mxu0 %v627
    %711 = vmatpush.bf16.msra.mxu0 %v625
    %712 = vmatpush.bf16.msra.mxu0 %v623
    %713 = vmatpush.bf16.msra.mxu0 %v621
    %714 = vmatpush.bf16.msra.mxu0 %v619
    %715 = vmatpush.bf16.msra.mxu0 %v617
    %716 = vmatmul.bf16.gmra.mxu0 %v226
    %v717 = vpop.f32.mrf.mxu0
    %v718 = vadd.f32 %v517, %v717
    %v719 = vpop.f32.mrf.mxu0
    %v720 = vadd.f32 %v517, %v719
    %721 = vdwg.mxu0
    %722 = vmatpush.bf16.msra.mxu0 %v647
    %723 = vmatpush.bf16.msra.mxu0 %v645
    %724 = vmatpush.bf16.msra.mxu0 %v643
    %725 = vmatpush.bf16.msra.mxu0 %v641
    %726 = vmatpush.bf16.msra.mxu0 %v639
    %727 = vmatpush.bf16.msra.mxu0 %v637
    %728 = vmatpush.bf16.msra.mxu0 %v635
    %729 = vmatpush.bf16.msra.mxu0 %v633
    %730 = vmatmul.bf16.gmra.mxu0 %v227
    %v731 = vpop.f32.mrf.mxu0
    %v732 = vadd.f32 %v718, %v731
    %v733 = vpop.f32.mrf.mxu0
    %v734 = vadd.f32 %v720, %v733
    %735 = vdwg.mxu0
    %v736 = vpack.c.bf16 %v478, %v450
    %v737 = vpack.c.bf16 %v480, %v452
    %738 = vst [vmem:[#allocation11] sm:$0xff] %v736
    %739 = vst [vmem:[#allocation11 + $0x8] sm:$0xff] %v737
    %v740 = vpack.c.bf16 %v732, %v704
    %v741 = vpack.c.bf16 %v734, %v706
    %742 = vst [vmem:[#allocation12] sm:$0xff] %v740
    %743 = vst [vmem:[#allocation12 + $0x8] sm:$0xff] %v741
    // Predicated region
    $region50: #{tpu_custom_call.1} parent=1 // pred_check
      _
    $region51: #{tpu_custom_call.1} parent=1 // pred_check_branch
      %745 = sbr.rel (0) target = $region53
    $region52: #{tpu_custom_call.1} parent=1 // pred_region
      %747 = vsyncadd [#allocation4], 0
      %s748 = sshll.u32 [#allocation11], 4
      %s749 = int_to_ptr.vmem [resolvable:$true] %s748
      %s750 = sshll.u32 %s7, 4
      %s751 = int_to_ptr.hbm [resolvable:$true] %s750
      %756 = dma.vmem_to_hbm [thread:$0]  %s749, 256, %s751, [#allocation4], 128, 128, 8
    $region53: #{tpu_custom_call.1} parent=1 // pred_fallthru
      _
    // Predicated region
    $region54: #{tpu_custom_call.1} parent=1 // pred_check
      _
    $region55: #{tpu_custom_call.1} parent=1 // pred_check_branch
      %758 = sbr.rel (0) target = $region57
    $region56: #{tpu_custom_call.1} parent=1 // pred_region
      %760 = vsyncadd [#allocation13], 0
      %s761 = sshll.u32 [#allocation12], 4
      %s762 = int_to_ptr.vmem [resolvable:$true] %s761
      %s763 = sshll.u32 %s8, 4
      %s764 = int_to_ptr.hbm [resolvable:$true] %s763
      %769 = dma.vmem_to_hbm [thread:$0]  %s762, 256, %s764, [#allocation13], 128, 128, 8
    $region57: #{tpu_custom_call.1} parent=1 // pred_fallthru
      _
    // Predicated region
    $region58: #{tpu_custom_call.1} parent=1 // pred_check
      _
    $region59: #{tpu_custom_call.1} parent=1 // pred_check_branch
      %771 = sbr.rel (0) target = $region61
    $region60: #{tpu_custom_call.1} parent=1 // pred_region
      %773 = dma.done [#allocation4], 256
    $region61: #{tpu_custom_call.1} parent=1 // pred_fallthru
      _
    // Predicated region
    $region62: #{tpu_custom_call.1} parent=1 // pred_check
      _
    $region63: #{tpu_custom_call.1} parent=1 // pred_check_branch
      %775 = sbr.rel (0) target = $region65
    $region64: #{tpu_custom_call.1} parent=1 // pred_region
      %777 = dma.done [#allocation13], 256
    $region65: #{tpu_custom_call.1} parent=1 // pred_fallthru
      _
    %778 = vsyncpa [#allocation3], 1
    %779 = vsyncpa [#allocation6], 1
    %780 = vsyncpa [#allocation9], 1
    %781 = vsyncpa [#allocation4], 1
    %782 = vsyncpa [#allocation13], 1

</llo_original>
